<compile_context>
chip_gen: v6e
topology: v6e:2x2x1
jax: 0.10.0
libtpu: 0.0.40
codegen_flags: <defaults>
</compile_context>

<pallas_src>
import jax
import jax.numpy as jnp
from jax.experimental import pallas as pl
from jax.experimental.pallas import tpu as pltpu


def _round_up(x, m):
    return ((x + m - 1) // m) * m


def _value_kernel(state_ref, w1_ref, b1_ref, w2_ref, b2_ref, w3_ref, b3_ref,
                  out_ref):
    """Fused MLP on one batch tile: (TB,S) -relu-> (TB,H) -relu-> (TB,H) -> (TB,1)."""
    cd = w1_ref.dtype                                   # matmul input dtype (bf16)
    x = state_ref[...]                                  # (TB, S) f32

    h = jnp.dot(x.astype(cd), w1_ref[...],
                preferred_element_type=jnp.float32)     # (TB, H), f32 accumulate
    h = jnp.maximum(h + b1_ref[...], 0.0).astype(cd)    # relu in f32, keep bf16

    h = jnp.dot(h, w2_ref[...],
                preferred_element_type=jnp.float32)     # (TB, H)
    h = jnp.maximum(h + b2_ref[...], 0.0)               # f32 for the VPU reduce

    # Layer 3: one output column -> VPU multiply + lane reduction (off the MXU).
    w3 = w3_ref[...].astype(jnp.float32)                # (1, H)
    v = jnp.sum(h * w3, axis=-1, keepdims=True)         # (TB, 1)
    out_ref[...] = (v + b3_ref[...]).astype(out_ref.dtype)


def value_forward(state, params, *, tile_b=4096):
    """state: (B, num_inputs) f32. params: dict from init_value_params. Returns (B, 1)."""
    B, S = state.shape
    H = params["w1"].shape[1]

    # --- batch tile selection ---------------------------------------------
    tile_b = max(8, min(int(tile_b), B))
    # Keep >= 2 grid tiles so the "parallel" batch axis actually lands on both
    # TensorCores on v7x; the extra grid step is ~0.35us on v5e/v6e (noise).
    if B > 8 and pl.cdiv(B, tile_b) < 2:
        tile_b = pl.cdiv(B, 2)
    # (8,128) legality: sublane block dim must be a multiple of 8 unless it
    # equals the full batch dim.
    if tile_b != B:
        tile_b = _round_up(tile_b, 8)
    grid = (pl.cdiv(B, tile_b),)

    resident = lambda i: (0, 0)                         # same block every step ->
    in_specs = [                                        # weights DMA'd once, stay in VMEM
        pl.BlockSpec((tile_b, S), lambda i: (i, 0)),    # state streams tile-by-tile
        pl.BlockSpec((S, H), resident),
        pl.BlockSpec((1, H), resident),
        pl.BlockSpec((H, H), resident),
        pl.BlockSpec((1, H), resident),
        pl.BlockSpec((1, H), resident),                 # w3 as a row (1, H)
        pl.BlockSpec((1, 1), resident),                 # b3 scalar
    ]
    out_specs = pl.BlockSpec((tile_b, 1), lambda i: (i, 0))   # true (B, 1) output

    bytes_accessed = (
        state.size * state.dtype.itemsize
        + sum(params[k].size * params[k].dtype.itemsize
              for k in ("w1", "b1", "w2", "b2", "w3", "b3"))
        + B * 4)
    cost = pl.CostEstimate(
        flops=2 * B * (S * H + H * H + H),              # layer 3 is 2*B*H VPU flops
        transcendentals=0,
        bytes_accessed=bytes_accessed)

    return pl.pallas_call(
        _value_kernel,
        out_shape=jax.ShapeDtypeStruct((B, 1), jnp.float32),
        grid=grid,
        in_specs=in_specs,
        out_specs=out_specs,
        compiler_params=pltpu.CompilerParams(
            dimension_semantics=("parallel",)),         # v7x: batch tiles across 2 TCs
        cost_estimate=cost,
    )(state,
      params["w1"], params["b1"],
      params["w2"], params["b2"],
      params["w3"], params["b3"])


def init_value_params(key, num_inputs, hidden_dim, *, weight_dtype=jnp.bfloat16):
    """Mimics weights_init_: xavier_uniform (gain=1) weights, zero biases.
       W1/W2 stored as (in, out); W3 stored as a (1, hidden_dim) row for the
       VPU layer-3 path; b3 is (1, 1)."""
    k1, k2, k3 = jax.random.split(key, 3)

    def xavier(k, fan_in, fan_out):
        bound = jnp.sqrt(6.0 / (fan_in + fan_out)).astype(jnp.float32)
        return jax.random.uniform(k, (fan_in, fan_out), jnp.float32, -bound, bound)

    w1 = xavier(k1, num_inputs, hidden_dim)
    w2 = xavier(k2, hidden_dim, hidden_dim)
    w3 = xavier(k3, hidden_dim, 1)                      # PyTorch fan_in/out of linear3

    return {
        "w1": w1.astype(weight_dtype),
        "b1": jnp.zeros((1, hidden_dim), jnp.float32),
        "w2": w2.astype(weight_dtype),
        "b2": jnp.zeros((1, hidden_dim), jnp.float32),
        "w3": w3.reshape(1, hidden_dim).astype(weight_dtype),
        "b3": jnp.zeros((1, 1), jnp.float32),
    }


def value_ref(state, params):
    """Pure-JAX reference with matching precision (bf16 matmul inputs, f32 accumulate)."""
    cd = params["w1"].dtype
    h = jnp.dot(state.astype(cd), params["w1"],
                preferred_element_type=jnp.float32) + params["b1"]
    h = jnp.maximum(h, 0.0).astype(cd)
    h = jnp.dot(h, params["w2"],
                preferred_element_type=jnp.float32) + params["b2"]
    h = jnp.maximum(h, 0.0)
    v = jnp.sum(h * params["w3"].astype(jnp.float32), axis=-1, keepdims=True)
    return v + params["b3"]


if __name__ == "__main__":
    # MXU-friendly small shapes: hidden a multiple of 128; batch small, but the
    # >=2-tile guard still exercises the pipelined grid (2 tiles of 128 rows).
    batch, num_inputs, hidden_dim = 256, 16, 128

    key = jax.random.PRNGKey(0)
    k_state, k_params = jax.random.split(key)

    state = jax.random.normal(k_state, (batch, num_inputs), jnp.float32)
    params = init_value_params(k_params, num_inputs, hidden_dim)

    out = value_forward(state, params)
    out = jax.block_until_ready(out)

    ref = value_ref(state, params)
    assert out.shape == (batch, 1)
    assert jnp.allclose(out, ref, atol=1e-4, rtol=1e-4), "mismatch vs reference"

    print("KERNEL_OK")
</pallas_src>

<mosaic_0001>
module attributes {stable_mosaic.version = 11 : i64} {
  func.func @_value_kernel(%arg0: i32, %arg1: memref<128x16xf32, #tpu.memory_space<vmem>>, %arg2: memref<16x128xbf16, #tpu.memory_space<vmem>>, %arg3: memref<1x128xf32, #tpu.memory_space<vmem>>, %arg4: memref<128x128xbf16, #tpu.memory_space<vmem>>, %arg5: memref<1x128xf32, #tpu.memory_space<vmem>>, %arg6: memref<1x128xbf16, #tpu.memory_space<vmem>>, %arg7: memref<1x1xf32, #tpu.memory_space<vmem>>, %arg8: memref<128x1xf32, #tpu.memory_space<vmem>>) attributes {dimension_semantics = [#tpu.dimension_semantics<parallel>], iteration_bounds = array<i64: 2>, scalar_prefetch = 0 : i64, scratch_operands = 0 : i64, tpu.core_type = #tpu.core_type<tc>, window_params = [{transform_indices = @transform_0, window_bounds = array<i64: 128, 16>}, {pipeline_mode = #tpu.pipeline_mode<synchronous>, transform_indices = @transform_1, window_bounds = array<i64: 16, 128>}, {pipeline_mode = #tpu.pipeline_mode<synchronous>, transform_indices = @transform_2, window_bounds = array<i64: 1, 128>}, {pipeline_mode = #tpu.pipeline_mode<synchronous>, transform_indices = @transform_3, window_bounds = array<i64: 128, 128>}, {pipeline_mode = #tpu.pipeline_mode<synchronous>, transform_indices = @transform_4, window_bounds = array<i64: 1, 128>}, {pipeline_mode = #tpu.pipeline_mode<synchronous>, transform_indices = @transform_5, window_bounds = array<i64: 1, 128>}, {pipeline_mode = #tpu.pipeline_mode<synchronous>, transform_indices = @transform_6, window_bounds = array<i64: 1, 1>}, {transform_indices = @transform_7, window_bounds = array<i64: 128, 1>}]} {
    %c0 = arith.constant 0 : index
    %c0_0 = arith.constant 0 : index
    %0 = vector.load %arg1[%c0, %c0_0] : memref<128x16xf32, #tpu.memory_space<vmem>>, vector<128x16xf32>
    %1 = arith.truncf %0 : vector<128x16xf32> to vector<128x16xbf16>
    %c0_1 = arith.constant 0 : index
    %c0_2 = arith.constant 0 : index
    %2 = vector.load %arg2[%c0_1, %c0_2] : memref<16x128xbf16, #tpu.memory_space<vmem>>, vector<16x128xbf16>
    %cst = arith.constant dense<0.000000e+00> : vector<128x128xf32>
    %3 = tpu.matmul %1, %2, %cst {dimension_numbers = #tpu.dot_dimension_numbers<[1], [0], [0], [1], [0, 0, 1, 1], [], []>} : vector<128x16xbf16>, vector<16x128xbf16>, vector<128x128xf32> -> vector<128x128xf32>
    %c0_3 = arith.constant 0 : index
    %c0_4 = arith.constant 0 : index
    %4 = vector.load %arg3[%c0_3, %c0_4] : memref<1x128xf32, #tpu.memory_space<vmem>>, vector<1x128xf32>
    %5 = vector.broadcast %4 : vector<1x128xf32> to vector<128x128xf32>
    %6 = arith.addf %3, %5 : vector<128x128xf32>
    %cst_5 = arith.constant 0.000000e+00 : f32
    %7 = vector.broadcast %cst_5 : f32 to vector<128x128xf32>
    %8 = arith.maximumf %6, %7 : vector<128x128xf32>
    %9 = arith.truncf %8 : vector<128x128xf32> to vector<128x128xbf16>
    %c0_6 = arith.constant 0 : index
    %c0_7 = arith.constant 0 : index
    %10 = vector.load %arg4[%c0_6, %c0_7] : memref<128x128xbf16, #tpu.memory_space<vmem>>, vector<128x128xbf16>
    %cst_8 = arith.constant dense<0.000000e+00> : vector<128x128xf32>
    %11 = tpu.matmul %9, %10, %cst_8 {dimension_numbers = #tpu.dot_dimension_numbers<[1], [0], [0], [1], [0, 0, 1, 1], [], []>} : vector<128x128xbf16>, vector<128x128xbf16>, vector<128x128xf32> -> vector<128x128xf32>
    %c0_9 = arith.constant 0 : index
    %c0_10 = arith.constant 0 : index
    %12 = vector.load %arg5[%c0_9, %c0_10] : memref<1x128xf32, #tpu.memory_space<vmem>>, vector<1x128xf32>
    %13 = vector.broadcast %12 : vector<1x128xf32> to vector<128x128xf32>
    %14 = arith.addf %11, %13 : vector<128x128xf32>
    %cst_11 = arith.constant 0.000000e+00 : f32
    %15 = vector.broadcast %cst_11 : f32 to vector<128x128xf32>
    %16 = arith.maximumf %14, %15 : vector<128x128xf32>
    %c0_12 = arith.constant 0 : index
    %c0_13 = arith.constant 0 : index
    %17 = vector.load %arg6[%c0_12, %c0_13] : memref<1x128xbf16, #tpu.memory_space<vmem>>, vector<1x128xbf16>
    %18 = arith.extf %17 : vector<1x128xbf16> to vector<1x128xf32>
    %19 = vector.broadcast %18 : vector<1x128xf32> to vector<128x128xf32>
    %20 = arith.mulf %16, %19 : vector<128x128xf32>
    %cst_14 = arith.constant dense<0.000000e+00> : vector<128xf32>
    %21 = vector.multi_reduction <add>, %20, %cst_14 [1] : vector<128x128xf32> to vector<128xf32>
    %22 = vector.shape_cast %21 : vector<128xf32> to vector<128x1xf32>
    %c0_15 = arith.constant 0 : index
    %c0_16 = arith.constant 0 : index
    %23 = vector.load %arg7[%c0_15, %c0_16] : memref<1x1xf32, #tpu.memory_space<vmem>>, vector<1x1xf32>
    %24 = vector.broadcast %23 : vector<1x1xf32> to vector<128x1xf32>
    %25 = arith.addf %22, %24 : vector<128x1xf32>
    %c0_17 = arith.constant 0 : index
    %c0_18 = arith.constant 0 : index
    %26 = vector.load %arg8[%c0_17, %c0_18] : memref<128x1xf32, #tpu.memory_space<vmem>>, vector<128x1xf32>
    tpu.vector_store %arg8[%c0_17, %c0_18], %25 {strides = array<i32>} : memref<128x1xf32, #tpu.memory_space<vmem>>, vector<128x1xf32>,
    return
  }
  func.func @transform_0(%arg0: i32) -> (i32, i32) {
    %c0_i32 = arith.constant 0 : i32
    %c0_i32_0 = arith.constant 0 : i32
    return %arg0, %c0_i32 : i32, i32
  }
  func.func @transform_1(%arg0: i32) -> (i32, i32) {
    %c0_i32 = arith.constant 0 : i32
    %c0_i32_0 = arith.constant 0 : i32
    %c0_i32_1 = arith.constant 0 : i32
    return %c0_i32, %c0_i32_0 : i32, i32
  }
  func.func @transform_2(%arg0: i32) -> (i32, i32) {
    %c0_i32 = arith.constant 0 : i32
    %c0_i32_0 = arith.constant 0 : i32
    %c0_i32_1 = arith.constant 0 : i32
    return %c0_i32, %c0_i32_0 : i32, i32
  }
  func.func @transform_3(%arg0: i32) -> (i32, i32) {
    %c0_i32 = arith.constant 0 : i32
    %c0_i32_0 = arith.constant 0 : i32
    %c0_i32_1 = arith.constant 0 : i32
    return %c0_i32, %c0_i32_0 : i32, i32
  }
  func.func @transform_4(%arg0: i32) -> (i32, i32) {
    %c0_i32 = arith.constant 0 : i32
    %c0_i32_0 = arith.constant 0 : i32
    %c0_i32_1 = arith.constant 0 : i32
    return %c0_i32, %c0_i32_0 : i32, i32
  }
  func.func @transform_5(%arg0: i32) -> (i32, i32) {
    %c0_i32 = arith.constant 0 : i32
    %c0_i32_0 = arith.constant 0 : i32
    %c0_i32_1 = arith.constant 0 : i32
    return %c0_i32, %c0_i32_0 : i32, i32
  }
  func.func @transform_6(%arg0: i32) -> (i32, i32) {
    %c0_i32 = arith.constant 0 : i32
    %c0_i32_0 = arith.constant 0 : i32
    %c0_i32_1 = arith.constant 0 : i32
    return %c0_i32, %c0_i32_0 : i32, i32
  }
  func.func @transform_7(%arg0: i32) -> (i32, i32) {
    %c0_i32 = arith.constant 0 : i32
    %c0_i32_0 = arith.constant 0 : i32
    return %arg0, %c0_i32 : i32, i32
  }
}

</mosaic_0001>

<llo_original>
// kernel: tpu_custom_call.1
$region0: #{tpu_custom_call.1}
  #allocation0 [shape = 'u32[]', space=smem, size = 0x4, offset = 0x4, fixed_abs, tag = 'smem constant byte address 0x4 - core index']
  #allocation1 [shape = 'u32[144,128]{1,0:T(1,128)}', space=vmem, size = 0x12000, scoped, tag = 'internal scratch']
  #allocation2 [shape = 'f32[1,1]{1,0:T(1,128)S(1)}', space=vmem, size = 0x200, scoped, tag = 'scoped memory for tpu_custom_call.1']
  %s0 = inlined_call_operand.vmem [shape: f32[256,16], index: 0, kind: input, shape index: {}]
  %s1 = inlined_call_operand.vmem [shape: bf16[16,128], index: 1, kind: input, shape index: {}]
  %s2 = inlined_call_operand.vmem [shape: f32[1,128], index: 2, kind: input, shape index: {}]
  %s3 = inlined_call_operand.vmem [shape: bf16[128,128], index: 3, kind: input, shape index: {}]
  %s4 = inlined_call_operand.vmem [shape: f32[1,128], index: 4, kind: input, shape index: {}]
  %s5 = inlined_call_operand.vmem [shape: bf16[1,128], index: 5, kind: input, shape index: {}]
  %s6 = inlined_call_operand.<no memory space> [shape: f32[1,1], index: 6, kind: input, shape index: {}]
  %s7 = inlined_call_operand.vmem [shape: f32[256,1], index: 7, kind: output, shape index: {}]
  %s8 = sld [smem:[#allocation0]]
  $region61: #{tpu_custom_call.1} parent=0
    _
  %s10 = ssub.s32 1, %s8
  %s11 = scalar_select 0, %s10, %s8
  %v12 = vstv %s6
  %13 = vst [vmem:[#allocation2] sm:$0x1] %v12
  loop: start=0, step=1, limit=4
  $region2: #{tpu_custom_call.1} parent=0 // loop_pre_header
    _
  $region3: #{tpu_custom_call.1} parent=0 // loop_header
    %s15 = sphi 0, %s19
    %p16 = scmp.ge.s32.totalorder %s15, 4
    %s25 = sphi 0, %s27
    %s28 = sphi 0, %s25
    %s29 = sphi 0, %s28
    %s45 = sphi 0, %s29
    %s49 = sphi 0, %s49
    %s51 = sphi 0, %s49
    %s52 = sphi 0, %s51
    %s66 = sphi 0, %s52
    %s70 = sphi 0, %s70
    %s72 = sphi 0, %s70
    %s73 = sphi 0, %s72
    %s87 = sphi 0, %s73
    %s91 = sphi 0, %s91
    %s93 = sphi 0, %s91
    %s94 = sphi 0, %s93
    %s108 = sphi 0, %s94
    %s112 = sphi 0, %s112
    %s114 = sphi 0, %s112
    %s115 = sphi 0, %s114
    %s129 = sphi 0, %s115
    %s133 = sphi 0, %s133
    %s135 = sphi 0, %s133
    %s136 = sphi 0, %s135
    %s150 = sphi 0, %s136
    %s154 = sphi 0, %s154
    %s156 = sphi 0, %s154
    %s157 = sphi 0, %s156
    %s171 = sphi 0, %s157
    %s177 = sphi 0, %s179
    %s180 = sphi 0, %s177
    %s181 = sphi 0, %s180
    %s197 = sphi 0, %s181
  $region4: #{tpu_custom_call.1} parent=0 // loop_header_branch
    %18 = sbr.rel (%p16) target = $region8
  $region5: #{tpu_custom_call.1} parent=0 // loop_body
    %s20 = ssub.s32 %s15, 1
    %s21 = ssub.s32 %s15, 2
    %s22 = sadd.s32 %s15, 1
    %s23 = ssub.s32 %s15, %s22
    %p24 = scmp.eq.s32.totalorder %s23, 0
    %s26 = sadd.s32 %s25, 1
    %s27 = scalar_select %p24, %s25, %s26
    %p30 = pneg %p24
    %p31 = scmp.eq.s32.totalorder %s15, 1
    %p32 = por %p30, %p31
    %p33 = scmp.ne.s32.totalorder %s25, %s28
    %p34 = scmp.eq.s32.totalorder %s15, 0
    %p35 = por %p33, %p34
    %p36 = scmp.ne.s32.totalorder %s25, %s28
    %p37 = scmp.eq.s32.totalorder %s20, 1
    %p38 = por %p36, %p37
    %p39 = scmp.ne.s32.totalorder %s28, %s29
    %p40 = scmp.eq.s32.totalorder %s20, 0
    %p41 = por %p39, %p40
    %p42 = scmp.ne.s32.totalorder %s28, %s29
    %p43 = scmp.eq.s32.totalorder %s21, 1
    %p44 = por %p42, %p43
    %p46 = scmp.ne.s32.totalorder %s29, %s45
    %p47 = scmp.eq.s32.totalorder %s21, 0
    %p48 = por %p46, %p47
    %s50 = sadd.s32 %s49, 1
    %p53 = scmp.eq.s32.totalorder %s15, 1
    %p54 = scmp.ne.s32.totalorder %s49, %s51
    %p55 = scmp.eq.s32.totalorder %s15, 0
    %p56 = por %p54, %p55
    %p57 = scmp.ne.s32.totalorder %s49, %s51
    %p58 = scmp.eq.s32.totalorder %s20, 1
    %p59 = por %p57, %p58
    %p60 = scmp.ne.s32.totalorder %s51, %s52
    %p61 = scmp.eq.s32.totalorder %s20, 0
    %p62 = por %p60, %p61
    %p63 = scmp.ne.s32.totalorder %s51, %s52
    %p64 = scmp.eq.s32.totalorder %s21, 1
    %p65 = por %p63, %p64
    %p67 = scmp.ne.s32.totalorder %s52, %s66
    %p68 = scmp.eq.s32.totalorder %s21, 0
    %p69 = por %p67, %p68
    %s71 = sadd.s32 %s70, 1
    %p74 = scmp.eq.s32.totalorder %s15, 1
    %p75 = scmp.ne.s32.totalorder %s70, %s72
    %p76 = scmp.eq.s32.totalorder %s15, 0
    %p77 = por %p75, %p76
    %p78 = scmp.ne.s32.totalorder %s70, %s72
    %p79 = scmp.eq.s32.totalorder %s20, 1
    %p80 = por %p78, %p79
    %p81 = scmp.ne.s32.totalorder %s72, %s73
    %p82 = scmp.eq.s32.totalorder %s20, 0
    %p83 = por %p81, %p82
    %p84 = scmp.ne.s32.totalorder %s72, %s73
    %p85 = scmp.eq.s32.totalorder %s21, 1
    %p86 = por %p84, %p85
    %p88 = scmp.ne.s32.totalorder %s73, %s87
    %p89 = scmp.eq.s32.totalorder %s21, 0
    %p90 = por %p88, %p89
    %s92 = sadd.s32 %s91, 1
    %p95 = scmp.eq.s32.totalorder %s15, 1
    %p96 = scmp.ne.s32.totalorder %s91, %s93
    %p97 = scmp.eq.s32.totalorder %s15, 0
    %p98 = por %p96, %p97
    %p99 = scmp.ne.s32.totalorder %s91, %s93
    %p100 = scmp.eq.s32.totalorder %s20, 1
    %p101 = por %p99, %p100
    %p102 = scmp.ne.s32.totalorder %s93, %s94
    %p103 = scmp.eq.s32.totalorder %s20, 0
    %p104 = por %p102, %p103
    %p105 = scmp.ne.s32.totalorder %s93, %s94
    %p106 = scmp.eq.s32.totalorder %s21, 1
    %p107 = por %p105, %p106
    %p109 = scmp.ne.s32.totalorder %s94, %s108
    %p110 = scmp.eq.s32.totalorder %s21, 0
    %p111 = por %p109, %p110
    %s113 = sadd.s32 %s112, 1
    %p116 = scmp.eq.s32.totalorder %s15, 1
    %p117 = scmp.ne.s32.totalorder %s112, %s114
    %p118 = scmp.eq.s32.totalorder %s15, 0
    %p119 = por %p117, %p118
    %p120 = scmp.ne.s32.totalorder %s112, %s114
    %p121 = scmp.eq.s32.totalorder %s20, 1
    %p122 = por %p120, %p121
    %p123 = scmp.ne.s32.totalorder %s114, %s115
    %p124 = scmp.eq.s32.totalorder %s20, 0
    %p125 = por %p123, %p124
    %p126 = scmp.ne.s32.totalorder %s114, %s115
    %p127 = scmp.eq.s32.totalorder %s21, 1
    %p128 = por %p126, %p127
    %p130 = scmp.ne.s32.totalorder %s115, %s129
    %p131 = scmp.eq.s32.totalorder %s21, 0
    %p132 = por %p130, %p131
    %s134 = sadd.s32 %s133, 1
    %p137 = scmp.eq.s32.totalorder %s15, 1
    %p138 = scmp.ne.s32.totalorder %s133, %s135
    %p139 = scmp.eq.s32.totalorder %s15, 0
    %p140 = por %p138, %p139
    %p141 = scmp.ne.s32.totalorder %s133, %s135
    %p142 = scmp.eq.s32.totalorder %s20, 1
    %p143 = por %p141, %p142
    %p144 = scmp.ne.s32.totalorder %s135, %s136
    %p145 = scmp.eq.s32.totalorder %s20, 0
    %p146 = por %p144, %p145
    %p147 = scmp.ne.s32.totalorder %s135, %s136
    %p148 = scmp.eq.s32.totalorder %s21, 1
    %p149 = por %p147, %p148
    %p151 = scmp.ne.s32.totalorder %s136, %s150
    %p152 = scmp.eq.s32.totalorder %s21, 0
    %p153 = por %p151, %p152
    %s155 = sadd.s32 %s154, 1
    %p158 = scmp.eq.s32.totalorder %s15, 1
    %p159 = scmp.ne.s32.totalorder %s154, %s156
    %p160 = scmp.eq.s32.totalorder %s15, 0
    %p161 = por %p159, %p160
    %p162 = scmp.ne.s32.totalorder %s154, %s156
    %p163 = scmp.eq.s32.totalorder %s20, 1
    %p164 = por %p162, %p163
    %p165 = scmp.ne.s32.totalorder %s156, %s157
    %p166 = scmp.eq.s32.totalorder %s20, 0
    %p167 = por %p165, %p166
    %p168 = scmp.ne.s32.totalorder %s156, %s157
    %p169 = scmp.eq.s32.totalorder %s21, 1
    %p170 = por %p168, %p169
    %p172 = scmp.ne.s32.totalorder %s157, %s171
    %p173 = scmp.eq.s32.totalorder %s21, 0
    %p174 = por %p172, %p173
    %s175 = ssub.s32 %s15, %s22
    %p176 = scmp.eq.s32.totalorder %s175, 0
    %s178 = sadd.s32 %s177, 1
    %s179 = scalar_select %p176, %s177, %s178
    %p182 = pneg %p176
    %p183 = scmp.eq.s32.totalorder %s15, 1
    %p184 = por %p182, %p183
    %p185 = scmp.ne.s32.totalorder %s177, %s180
    %p186 = scmp.eq.s32.totalorder %s15, 0
    %p187 = por %p185, %p186
    %p188 = scmp.ne.s32.totalorder %s177, %s180
    %p189 = scmp.eq.s32.totalorder %s20, 1
    %p190 = por %p188, %p189
    %p191 = scmp.ne.s32.totalorder %s180, %s181
    %p192 = scmp.eq.s32.totalorder %s20, 0
    %p193 = por %p191, %p192
    %p194 = scmp.ne.s32.totalorder %s180, %s181
    %p195 = scmp.eq.s32.totalorder %s21, 1
    %p196 = por %p194, %p195
    %p198 = scmp.ne.s32.totalorder %s181, %s197
    %p199 = scmp.eq.s32.totalorder %s21, 0
    %p200 = por %p198, %p199
    %p201 = scmp.le.s32.totalorder 1, %s15
    %p202 = scmp.lt.s32.totalorder %s15, 3
    %p203 = pnand %p201, %p202
    %p204 = pneg %p203
    // Predicated region
    $region9: #{tpu_custom_call.1} parent=5 // pred_check
      _
    $region10: #{tpu_custom_call.1} parent=5 // pred_check_branch
      %206 = sbr.rel (%p203) target = $region12
    $region11: #{tpu_custom_call.1} parent=5 // pred_region
      %s207 = ssub.s32 %s15, 1
      // Predicated region
      $region13: #{tpu_custom_call.1} parent=11 // pred_check
        %p208 = pneg %p62
      $region14: #{tpu_custom_call.1} parent=11 // pred_check_branch
        %210 = sbr.rel (%p208) target = $region16
      $region15: #{tpu_custom_call.1} parent=11 // pred_region
        _
      $region16: #{tpu_custom_call.1} parent=11 // pred_fallthru
        _
      // Predicated region
      $region17: #{tpu_custom_call.1} parent=11 // pred_check
        %p211 = pneg %p83
      $region18: #{tpu_custom_call.1} parent=11 // pred_check_branch
        %213 = sbr.rel (%p211) target = $region20
      $region19: #{tpu_custom_call.1} parent=11 // pred_region
        _
      $region20: #{tpu_custom_call.1} parent=11 // pred_fallthru
        _
      // Predicated region
      $region21: #{tpu_custom_call.1} parent=11 // pred_check
        %p214 = pneg %p104
      $region22: #{tpu_custom_call.1} parent=11 // pred_check_branch
        %216 = sbr.rel (%p214) target = $region24
      $region23: #{tpu_custom_call.1} parent=11 // pred_region
        _
      $region24: #{tpu_custom_call.1} parent=11 // pred_fallthru
        _
      // Predicated region
      $region25: #{tpu_custom_call.1} parent=11 // pred_check
        %p217 = pneg %p125
      $region26: #{tpu_custom_call.1} parent=11 // pred_check_branch
        %219 = sbr.rel (%p217) target = $region28
      $region27: #{tpu_custom_call.1} parent=11 // pred_region
        _
      $region28: #{tpu_custom_call.1} parent=11 // pred_fallthru
        _
      // Predicated region
      $region29: #{tpu_custom_call.1} parent=11 // pred_check
        %p220 = pneg %p146
      $region30: #{tpu_custom_call.1} parent=11 // pred_check_branch
        %222 = sbr.rel (%p220) target = $region32
      $region31: #{tpu_custom_call.1} parent=11 // pred_region
        _
      $region32: #{tpu_custom_call.1} parent=11 // pred_fallthru
        _
      // Predicated region
      $region33: #{tpu_custom_call.1} parent=11 // pred_check
        %p223 = pneg %p167
      $region34: #{tpu_custom_call.1} parent=11 // pred_check_branch
        %225 = sbr.rel (%p223) target = $region36
      $region35: #{tpu_custom_call.1} parent=11 // pred_region
        _
      $region36: #{tpu_custom_call.1} parent=11 // pred_fallthru
        _
    $region12: #{tpu_custom_call.1} parent=5 // pred_fallthru
      _
    %p226 = scmp.lt.s32.totalorder %s15, 2
    // Predicated region
    $region37: #{tpu_custom_call.1} parent=5 // pred_check
      %p227 = pneg %p226
    $region38: #{tpu_custom_call.1} parent=5 // pred_check_branch
      %229 = sbr.rel (%p227) target = $region40
    $region39: #{tpu_custom_call.1} parent=5 // pred_region
      // Predicated region
      $region41: #{tpu_custom_call.1} parent=39 // pred_check
        %p230 = pneg %p35
      $region42: #{tpu_custom_call.1} parent=39 // pred_check_branch
        %232 = sbr.rel (%p230) target = $region44
      $region43: #{tpu_custom_call.1} parent=39 // pred_region
        %s233 = smul.u32 16, %s15
        %p234 = scmp.lt.s32.totalorder %s233, 31
        %s235 = scalar_select %p234, %s233, 31
        %s236 = smul.addr %s235, 8
        %s237 = scalar_lea.vmem %s0, %s236
        %s238 = smul.u32 16, %s15
      $region44: #{tpu_custom_call.1} parent=39 // pred_fallthru
        _
    $region40: #{tpu_custom_call.1} parent=5 // pred_fallthru
      _
    %p239 = scmp.le.s32.totalorder 1, %s15
    %p240 = scmp.lt.s32.totalorder %s15, 3
    %p241 = pnand %p239, %p240
    %p242 = pneg %p241
    // Predicated region
    $region45: #{tpu_custom_call.1} parent=5 // pred_check
      _
    $region46: #{tpu_custom_call.1} parent=5 // pred_check_branch
      %244 = sbr.rel (%p241) target = $region48
    $region47: #{tpu_custom_call.1} parent=5 // pred_region
      %s245 = ssub.s32 %s15, 1
      %s246 = smul.u32 16, %s20
      %p247 = scmp.lt.s32.totalorder %s246, 31
      %s248 = scalar_select %p247, %s246, 31
      %s249 = smul.addr %s248, 8
      %s250 = scalar_lea.vmem %s0, %s249
      %p251 = pneg %p41
      %p252 = pneg %p38
      %p253 = pneg %p62
      %p254 = pneg %p59
      %p255 = pneg %p83
      %p256 = pneg %p80
      %p257 = pneg %p104
      %p258 = pneg %p101
      %p259 = pneg %p125
      %p260 = pneg %p122
      %p261 = pneg %p146
      %p262 = pneg %p143
      %p263 = pneg %p167
      %p264 = pneg %p164
      %p265 = pneg %p193
      %p266 = pneg %p190
      %s267 = smul.u32 16, %s20
      %p268 = scmp.lt.s32.totalorder %s267, 31
      %s269 = scalar_select %p268, %s267, 31
      %s270 = smul.addr %s269, 8
      %s271 = scalar_lea.vmem %s7, %s270
      %s272 = smul.u32 16, %s20
      %p273 = scmp.lt.s32.totalorder %s272, 31
      %s274 = scalar_select %p273, %s272, 31
      %s275 = smul.addr %s274, 8
      %s276 = scalar_lea.vmem %s0, %s275
      %s277 = smul.u32 16, %s20
      %s278 = smul.u32 16, %s20
      %p279 = scmp.lt.s32.totalorder %s278, 31
      %s280 = scalar_select %p279, %s278, 31
      %s281 = smul.addr %s280, 8
      %s282 = scalar_lea.vmem %s7, %s281
      %s283 = smul.u32 16, %s20
      %v285 = vld [vmem:[%s276] sm:$0xff]
      %v286 = vld [vmem:[%s276 + $0x8] sm:$0xff]
      %v287 = vld [vmem:[%s276 + $0x10] sm:$0xff]
      %v288 = vld [vmem:[%s276 + $0x18] sm:$0xff]
      %v289 = vld [vmem:[%s276 + $0x20] sm:$0xff]
      %v290 = vld [vmem:[%s276 + $0x28] sm:$0xff]
      %v291 = vld [vmem:[%s276 + $0x30] sm:$0xff]
      %v292 = vld [vmem:[%s276 + $0x38] sm:$0xff]
      %v293 = vld [vmem:[%s276 + $0x40] sm:$0xff]
      %v294 = vld [vmem:[%s276 + $0x48] sm:$0xff]
      %v295 = vld [vmem:[%s276 + $0x50] sm:$0xff]
      %v296 = vld [vmem:[%s276 + $0x58] sm:$0xff]
      %v297 = vld [vmem:[%s276 + $0x60] sm:$0xff]
      %v298 = vld [vmem:[%s276 + $0x68] sm:$0xff]
      %v299 = vld [vmem:[%s276 + $0x70] sm:$0xff]
      %v300 = vld [vmem:[%s276 + $0x78] sm:$0xff]
      %v301 = vpack.c.bf16 %v286, %v285
      %v302 = vpack.c.bf16 %v288, %v287
      %v303 = vpack.c.bf16 %v290, %v289
      %v304 = vpack.c.bf16 %v292, %v291
      %v305 = vpack.c.bf16 %v294, %v293
      %v306 = vpack.c.bf16 %v296, %v295
      %v307 = vpack.c.bf16 %v298, %v297
      %v308 = vpack.c.bf16 %v300, %v299
      %v309 = vld [vmem:[%s1] sm:$0xf]
      %v310 = vld [vmem:[%s1 + $0x4] sm:$0xf]
      %v311 = vld [vmem:[%s2] sm:$0x1]
      %v313 = vlaneseq
      %v314 = vshrl.u32 %v313, 7
      %v315 = vsub.s32 0, %v314
      %v316 = vrot.slane %v311, %v315
      %v320 = vunpack.c.l.b16 %v309
      %v321 = vunpack.c.l.b16 %v310
      %v322 = vpack.c.b16 %v321, %v320
      %vm324 = vcmask 130048
      %v326 = vsel %vm324, %v301, 0
      %v329 = vsel %vm324, %v302, 0
      %v332 = vsel %vm324, %v303, 0
      %v335 = vsel %vm324, %v304, 0
      %v338 = vsel %vm324, %v305, 0
      %v341 = vsel %vm324, %v306, 0
      %v344 = vsel %vm324, %v307, 0
      %v347 = vsel %vm324, %v308, 0
      %349 = vmatprep.subr.bf16.mxu0 0
      %350 = vmatpush1.bf16.msra.mxu0 0
      %351 = vmatprep.subr.bf16.mxu0 0
      %352 = vmatpush1.bf16.msra.mxu0 0
      %353 = vmatprep.subr.bf16.mxu0 0
      %354 = vmatpush1.bf16.msra.mxu0 0
      %355 = vmatprep.subr.bf16.mxu0 0
      %356 = vmatpush1.bf16.msra.mxu0 0
      %357 = vmatprep.subr.bf16.mxu0 0
      %358 = vmatpush1.bf16.msra.mxu0 0
      %359 = vmatprep.subr.bf16.mxu0 0
      %360 = vmatpush1.bf16.msra.mxu0 0
      %361 = vmatprep.subr.bf16.mxu0 0
      %362 = vmatpush1.bf16.msra.mxu0 0
      %363 = vmatprep.subr.bf16.mxu0 0
      %364 = vmatpush1.bf16.msra.mxu0 %v322
      %365 = vmatprep.subr.bf16.mxu0 0
      %366 = vmatpush2.bf16.msra.mxu0 0
      %367 = vmatprep.subr.bf16.mxu0 0
      %368 = vmatpush2.bf16.msra.mxu0 0
      %369 = vmatprep.subr.bf16.mxu0 0
      %370 = vmatpush2.bf16.msra.mxu0 0
      %371 = vmatprep.subr.bf16.mxu0 0
      %372 = vmatpush2.bf16.msra.mxu0 0
      %373 = vmatprep.subr.bf16.mxu0 0
      %374 = vmatpush2.bf16.msra.mxu0 0
      %375 = vmatprep.subr.bf16.mxu0 0
      %376 = vmatpush2.bf16.msra.mxu0 0
      %377 = vmatprep.subr.bf16.mxu0 0
      %378 = vmatpush2.bf16.msra.mxu0 0
      %379 = vmatprep.subr.bf16.mxu0 0
      %380 = vmatpush2.bf16.msra.mxu0 0
      %381 = vmatprep.mubr.bf16.mxu0 0
      %382 = vmatmul.mubr.bf16.gmra.mxu0 %v326
      %v383 = vpop.f32.mrf.mxu0
      %v384 = vadd.f32 %v316, %v383
      %v385 = vpop.f32.mrf.mxu0
      %v386 = vpop.f32.mrf.mxu0
      %v387 = vadd.f32 %v316, %v386
      %v388 = vpop.f32.mrf.mxu0
      %389 = vmatprep.mubr.bf16.mxu0 0
      %390 = vmatmul.mubr.bf16.gmra.mxu0 %v329
      %v391 = vpop.f32.mrf.mxu0
      %v392 = vadd.f32 %v316, %v391
      %v393 = vpop.f32.mrf.mxu0
      %v394 = vpop.f32.mrf.mxu0
      %v395 = vadd.f32 %v316, %v394
      %v396 = vpop.f32.mrf.mxu0
      %397 = vmatprep.mubr.bf16.mxu0 0
      %398 = vmatmul.mubr.bf16.gmra.mxu0 %v332
      %v399 = vpop.f32.mrf.mxu0
      %v400 = vadd.f32 %v316, %v399
      %v401 = vpop.f32.mrf.mxu0
      %v402 = vpop.f32.mrf.mxu0
      %v403 = vadd.f32 %v316, %v402
      %v404 = vpop.f32.mrf.mxu0
      %405 = vmatprep.mubr.bf16.mxu0 0
      %406 = vmatmul.mubr.bf16.gmra.mxu0 %v335
      %v407 = vpop.f32.mrf.mxu0
      %v408 = vadd.f32 %v316, %v407
      %v409 = vpop.f32.mrf.mxu0
      %v410 = vpop.f32.mrf.mxu0
      %v411 = vadd.f32 %v316, %v410
      %v412 = vpop.f32.mrf.mxu0
      %413 = vmatprep.mubr.bf16.mxu0 0
      %414 = vmatmul.mubr.bf16.gmra.mxu0 %v338
      %v415 = vpop.f32.mrf.mxu0
      %v416 = vadd.f32 %v316, %v415
      %v417 = vpop.f32.mrf.mxu0
      %v418 = vpop.f32.mrf.mxu0
      %v419 = vadd.f32 %v316, %v418
      %v420 = vpop.f32.mrf.mxu0
      %421 = vmatprep.mubr.bf16.mxu0 0
      %422 = vmatmul.mubr.bf16.gmra.mxu0 %v341
      %v423 = vpop.f32.mrf.mxu0
      %v424 = vadd.f32 %v316, %v423
      %v425 = vpop.f32.mrf.mxu0
      %v426 = vpop.f32.mrf.mxu0
      %v427 = vadd.f32 %v316, %v426
      %v428 = vpop.f32.mrf.mxu0
      %429 = vmatprep.mubr.bf16.mxu0 0
      %430 = vmatmul.mubr.bf16.gmra.mxu0 %v344
      %v431 = vpop.f32.mrf.mxu0
      %v432 = vadd.f32 %v316, %v431
      %v433 = vpop.f32.mrf.mxu0
      %v434 = vpop.f32.mrf.mxu0
      %v435 = vadd.f32 %v316, %v434
      %v436 = vpop.f32.mrf.mxu0
      %437 = vmatprep.mubr.bf16.mxu0 0
      %438 = vmatmul.mubr.bf16.gmra.mxu0 %v347
      %v439 = vpop.f32.mrf.mxu0
      %v440 = vadd.f32 %v316, %v439
      %v441 = vpop.f32.mrf.mxu0
      %v442 = vpop.f32.mrf.mxu0
      %v443 = vadd.f32 %v316, %v442
      %v444 = vpop.f32.mrf.mxu0
      %445 = vdwg.mxu0
      %v446 = vmax.f32 %v384, 0.0
      %v447 = vmax.f32 %v387, 0.0
      %v448 = vmax.f32 %v392, 0.0
      %v449 = vmax.f32 %v395, 0.0
      %v450 = vmax.f32 %v400, 0.0
      %v451 = vmax.f32 %v403, 0.0
      %v452 = vmax.f32 %v408, 0.0
      %v453 = vmax.f32 %v411, 0.0
      %v454 = vmax.f32 %v416, 0.0
      %v455 = vmax.f32 %v419, 0.0
      %v456 = vmax.f32 %v424, 0.0
      %v457 = vmax.f32 %v427, 0.0
      %v458 = vmax.f32 %v432, 0.0
      %v459 = vmax.f32 %v435, 0.0
      %v460 = vmax.f32 %v440, 0.0
      %v461 = vmax.f32 %v443, 0.0
      %v462 = vpack.c.bf16 %v447, %v446
      %v463 = vpack.c.bf16 %v449, %v448
      %v464 = vpack.c.bf16 %v451, %v450
      %v465 = vpack.c.bf16 %v453, %v452
      %v466 = vpack.c.bf16 %v455, %v454
      %v467 = vpack.c.bf16 %v457, %v456
      %v468 = vpack.c.bf16 %v459, %v458
      %v469 = vpack.c.bf16 %v461, %v460
      %v470 = vld [vmem:[%s3] sm:$0xf]
      %v471 = vld [vmem:[%s3 + $0x4] sm:$0xf]
      %v472 = vld [vmem:[%s3 + $0x8] sm:$0xf]
      %v473 = vld [vmem:[%s3 + $0xc] sm:$0xf]
      %v474 = vld [vmem:[%s3 + $0x10] sm:$0xf]
      %v475 = vld [vmem:[%s3 + $0x14] sm:$0xf]
      %v476 = vld [vmem:[%s3 + $0x18] sm:$0xf]
      %v477 = vld [vmem:[%s3 + $0x1c] sm:$0xf]
      %v478 = vld [vmem:[%s3 + $0x20] sm:$0xf]
      %v479 = vld [vmem:[%s3 + $0x24] sm:$0xf]
      %v480 = vld [vmem:[%s3 + $0x28] sm:$0xf]
      %v481 = vld [vmem:[%s3 + $0x2c] sm:$0xf]
      %v482 = vld [vmem:[%s3 + $0x30] sm:$0xf]
      %v483 = vld [vmem:[%s3 + $0x34] sm:$0xf]
      %v484 = vld [vmem:[%s3 + $0x38] sm:$0xf]
      %v485 = vld [vmem:[%s3 + $0x3c] sm:$0xf]
      %v486 = vld [vmem:[%s4] sm:$0x1]
      %v488 = vlaneseq
      %v489 = vshrl.u32 %v488, 7
      %v490 = vsub.s32 0, %v489
      %v491 = vrot.slane %v486, %v490
      %v509 = vunpack.c.l.b16 %v470
      %v510 = vunpack.c.l.b16 %v471
      %v511 = vunpack.c.l.b16 %v472
      %v512 = vunpack.c.l.b16 %v473
      %v513 = vunpack.c.l.b16 %v474
      %v514 = vunpack.c.l.b16 %v475
      %v515 = vunpack.c.l.b16 %v476
      %v516 = vunpack.c.l.b16 %v477
      %v517 = vunpack.c.l.b16 %v478
      %v518 = vunpack.c.l.b16 %v479
      %v519 = vunpack.c.l.b16 %v480
      %v520 = vunpack.c.l.b16 %v481
      %v521 = vunpack.c.l.b16 %v482
      %v522 = vunpack.c.l.b16 %v483
      %v523 = vunpack.c.l.b16 %v484
      %v524 = vunpack.c.l.b16 %v485
      %v525 = vpack.c.b16 %v510, %v509
      %v526 = vpack.c.b16 %v512, %v511
      %v527 = vpack.c.b16 %v514, %v513
      %v528 = vpack.c.b16 %v516, %v515
      %v529 = vpack.c.b16 %v518, %v517
      %v530 = vpack.c.b16 %v520, %v519
      %v531 = vpack.c.b16 %v522, %v521
      %v532 = vpack.c.b16 %v524, %v523
      %541 = vmatprep.subr.bf16.mxu0 0
      %542 = vmatpush1.bf16.msra.mxu0 %v532
      %543 = vmatprep.subr.bf16.mxu0 0
      %544 = vmatpush1.bf16.msra.mxu0 %v531
      %545 = vmatprep.subr.bf16.mxu0 0
      %546 = vmatpush1.bf16.msra.mxu0 %v530
      %547 = vmatprep.subr.bf16.mxu0 0
      %548 = vmatpush1.bf16.msra.mxu0 %v529
      %549 = vmatprep.subr.bf16.mxu0 0
      %550 = vmatpush1.bf16.msra.mxu0 %v528
      %551 = vmatprep.subr.bf16.mxu0 0
      %552 = vmatpush1.bf16.msra.mxu0 %v527
      %553 = vmatprep.subr.bf16.mxu0 0
      %554 = vmatpush1.bf16.msra.mxu0 %v526
      %555 = vmatprep.subr.bf16.mxu0 0
      %556 = vmatpush1.bf16.msra.mxu0 %v525
      %557 = vmatprep.subr.bf16.mxu0 0
      %558 = vmatpush2.bf16.msra.mxu0 0
      %559 = vmatprep.subr.bf16.mxu0 0
      %560 = vmatpush2.bf16.msra.mxu0 0
      %561 = vmatprep.subr.bf16.mxu0 0
      %562 = vmatpush2.bf16.msra.mxu0 0
      %563 = vmatprep.subr.bf16.mxu0 0
      %564 = vmatpush2.bf16.msra.mxu0 0
      %565 = vmatprep.subr.bf16.mxu0 0
      %566 = vmatpush2.bf16.msra.mxu0 0
      %567 = vmatprep.subr.bf16.mxu0 0
      %568 = vmatpush2.bf16.msra.mxu0 0
      %569 = vmatprep.subr.bf16.mxu0 0
      %570 = vmatpush2.bf16.msra.mxu0 0
      %571 = vmatprep.subr.bf16.mxu0 0
      %572 = vmatpush2.bf16.msra.mxu0 0
      %573 = vmatprep.mubr.bf16.mxu0 0
      %574 = vmatmul.mubr.bf16.gmra.mxu0 %v462
      %v575 = vpop.f32.mrf.mxu0
      %v576 = vadd.f32 %v491, %v575
      %v577 = vpop.f32.mrf.mxu0
      %v578 = vpop.f32.mrf.mxu0
      %v579 = vadd.f32 %v491, %v578
      %v580 = vpop.f32.mrf.mxu0
      %581 = vmatprep.mubr.bf16.mxu0 0
      %582 = vmatmul.mubr.bf16.gmra.mxu0 %v463
      %v583 = vpop.f32.mrf.mxu0
      %v584 = vadd.f32 %v491, %v583
      %v585 = vpop.f32.mrf.mxu0
      %v586 = vpop.f32.mrf.mxu0
      %v587 = vadd.f32 %v491, %v586
      %v588 = vpop.f32.mrf.mxu0
      %589 = vmatprep.mubr.bf16.mxu0 0
      %590 = vmatmul.mubr.bf16.gmra.mxu0 %v464
      %v591 = vpop.f32.mrf.mxu0
      %v592 = vadd.f32 %v491, %v591
      %v593 = vpop.f32.mrf.mxu0
      %v594 = vpop.f32.mrf.mxu0
      %v595 = vadd.f32 %v491, %v594
      %v596 = vpop.f32.mrf.mxu0
      %597 = vmatprep.mubr.bf16.mxu0 0
      %598 = vmatmul.mubr.bf16.gmra.mxu0 %v465
      %v599 = vpop.f32.mrf.mxu0
      %v600 = vadd.f32 %v491, %v599
      %v601 = vpop.f32.mrf.mxu0
      %v602 = vpop.f32.mrf.mxu0
      %v603 = vadd.f32 %v491, %v602
      %v604 = vpop.f32.mrf.mxu0
      %605 = vmatprep.mubr.bf16.mxu0 0
      %606 = vmatmul.mubr.bf16.gmra.mxu0 %v466
      %v607 = vpop.f32.mrf.mxu0
      %v608 = vadd.f32 %v491, %v607
      %v609 = vpop.f32.mrf.mxu0
      %v610 = vpop.f32.mrf.mxu0
      %v611 = vadd.f32 %v491, %v610
      %v612 = vpop.f32.mrf.mxu0
      %613 = vmatprep.mubr.bf16.mxu0 0
      %614 = vmatmul.mubr.bf16.gmra.mxu0 %v467
      %v615 = vpop.f32.mrf.mxu0
      %v616 = vadd.f32 %v491, %v615
      %v617 = vpop.f32.mrf.mxu0
      %v618 = vpop.f32.mrf.mxu0
      %v619 = vadd.f32 %v491, %v618
      %v620 = vpop.f32.mrf.mxu0
      %621 = vmatprep.mubr.bf16.mxu0 0
      %622 = vmatmul.mubr.bf16.gmra.mxu0 %v468
      %v623 = vpop.f32.mrf.mxu0
      %v624 = vadd.f32 %v491, %v623
      %v625 = vpop.f32.mrf.mxu0
      %v626 = vpop.f32.mrf.mxu0
      %v627 = vadd.f32 %v491, %v626
      %v628 = vpop.f32.mrf.mxu0
      %629 = vmatprep.mubr.bf16.mxu0 0
      %630 = vmatmul.mubr.bf16.gmra.mxu0 %v469
      %v631 = vpop.f32.mrf.mxu0
      %v632 = vadd.f32 %v491, %v631
      %v633 = vpop.f32.mrf.mxu0
      %v634 = vpop.f32.mrf.mxu0
      %v635 = vadd.f32 %v491, %v634
      %v636 = vpop.f32.mrf.mxu0
      %637 = vdwg.mxu0
      %v638 = vmax.f32 %v576, 0.0
      %v639 = vmax.f32 %v579, 0.0
      %v640 = vmax.f32 %v584, 0.0
      %v641 = vmax.f32 %v587, 0.0
      %v642 = vmax.f32 %v592, 0.0
      %v643 = vmax.f32 %v595, 0.0
      %v644 = vmax.f32 %v600, 0.0
      %v645 = vmax.f32 %v603, 0.0
      %v646 = vmax.f32 %v608, 0.0
      %v647 = vmax.f32 %v611, 0.0
      %v648 = vmax.f32 %v616, 0.0
      %v649 = vmax.f32 %v619, 0.0
      %v650 = vmax.f32 %v624, 0.0
      %v651 = vmax.f32 %v627, 0.0
      %v652 = vmax.f32 %v632, 0.0
      %v653 = vmax.f32 %v635, 0.0
      %v654 = vld [vmem:[%s5] sm:$0x1]
      %v655 = vunpack.c.l.bf16 %v654
      %v656 = vlaneseq
      %v657 = vshrl.u32 %v656, 7
      %v658 = vsub.s32 0, %v657
      %v659 = vrot.slane %v655, %v658
      %v660 = vmul.f32 %v638, %v659
      %v661 = vmul.f32 %v639, %v659
      %v662 = vmul.f32 %v640, %v659
      %v663 = vmul.f32 %v641, %v659
      %v664 = vmul.f32 %v642, %v659
      %v665 = vmul.f32 %v643, %v659
      %v666 = vmul.f32 %v644, %v659
      %v667 = vmul.f32 %v645, %v659
      %v668 = vmul.f32 %v646, %v659
      %v669 = vmul.f32 %v647, %v659
      %v670 = vmul.f32 %v648, %v659
      %v671 = vmul.f32 %v649, %v659
      %v672 = vmul.f32 %v650, %v659
      %v673 = vmul.f32 %v651, %v659
      %v674 = vmul.f32 %v652, %v659
      %v675 = vmul.f32 %v653, %v659
      %676 = vadd.xlane.f32.xlu0 %v660
      %v677 = vpop.xlane.xlu0 %676
      %678 = vadd.xlane.f32.xlu0 %v661
      %v679 = vpop.xlane.xlu0 %678
      %680 = vadd.xlane.f32.xlu0 %v662
      %v681 = vpop.xlane.xlu0 %680
      %682 = vadd.xlane.f32.xlu0 %v663
      %v683 = vpop.xlane.xlu0 %682
      %684 = vadd.xlane.f32.xlu0 %v664
      %v685 = vpop.xlane.xlu0 %684
      %686 = vadd.xlane.f32.xlu0 %v665
      %v687 = vpop.xlane.xlu0 %686
      %688 = vadd.xlane.f32.xlu0 %v666
      %v689 = vpop.xlane.xlu0 %688
      %690 = vadd.xlane.f32.xlu0 %v667
      %v691 = vpop.xlane.xlu0 %690
      %692 = vadd.xlane.f32.xlu0 %v668
      %v693 = vpop.xlane.xlu0 %692
      %694 = vadd.xlane.f32.xlu0 %v669
      %v695 = vpop.xlane.xlu0 %694
      %696 = vadd.xlane.f32.xlu0 %v670
      %v697 = vpop.xlane.xlu0 %696
      %698 = vadd.xlane.f32.xlu0 %v671
      %v699 = vpop.xlane.xlu0 %698
      %700 = vadd.xlane.f32.xlu0 %v672
      %v701 = vpop.xlane.xlu0 %700
      %702 = vadd.xlane.f32.xlu0 %v673
      %v703 = vpop.xlane.xlu0 %702
      %704 = vadd.xlane.f32.xlu0 %v674
      %v705 = vpop.xlane.xlu0 %704
      %706 = vadd.xlane.f32.xlu0 %v675
      %v707 = vpop.xlane.xlu0 %706
      %v708 = vld [vmem:[#allocation2] sm:$0x1]
      %v710 = vlaneseq
      %v711 = vshrl.u32 %v710, 7
      %v712 = vsub.s32 0, %v711
      %v713 = vrot.slane %v708, %v712
      %v715 = vadd.f32 %v677, %v713
      %v716 = vadd.f32 %v679, %v713
      %v717 = vadd.f32 %v681, %v713
      %v718 = vadd.f32 %v683, %v713
      %v719 = vadd.f32 %v685, %v713
      %v720 = vadd.f32 %v687, %v713
      %v721 = vadd.f32 %v689, %v713
      %v722 = vadd.f32 %v691, %v713
      %v723 = vadd.f32 %v693, %v713
      %v724 = vadd.f32 %v695, %v713
      %v725 = vadd.f32 %v697, %v713
      %v726 = vadd.f32 %v699, %v713
      %v727 = vadd.f32 %v701, %v713
      %v728 = vadd.f32 %v703, %v713
      %v729 = vadd.f32 %v705, %v713
      %v730 = vadd.f32 %v707, %v713
      %vm731 = vcmask 7168
      %732 = vst.msk [vmem:[%s282] sm:$0xff] %vm731, %v715
      %733 = vst.msk [vmem:[%s282 + $0x8] sm:$0xff] %vm731, %v716
      %734 = vst.msk [vmem:[%s282 + $0x10] sm:$0xff] %vm731, %v717
      %735 = vst.msk [vmem:[%s282 + $0x18] sm:$0xff] %vm731, %v718
      %736 = vst.msk [vmem:[%s282 + $0x20] sm:$0xff] %vm731, %v719
      %737 = vst.msk [vmem:[%s282 + $0x28] sm:$0xff] %vm731, %v720
      %738 = vst.msk [vmem:[%s282 + $0x30] sm:$0xff] %vm731, %v721
      %739 = vst.msk [vmem:[%s282 + $0x38] sm:$0xff] %vm731, %v722
      %740 = vst.msk [vmem:[%s282 + $0x40] sm:$0xff] %vm731, %v723
      %741 = vst.msk [vmem:[%s282 + $0x48] sm:$0xff] %vm731, %v724
      %742 = vst.msk [vmem:[%s282 + $0x50] sm:$0xff] %vm731, %v725
      %743 = vst.msk [vmem:[%s282 + $0x58] sm:$0xff] %vm731, %v726
      %744 = vst.msk [vmem:[%s282 + $0x60] sm:$0xff] %vm731, %v727
      %745 = vst.msk [vmem:[%s282 + $0x68] sm:$0xff] %vm731, %v728
      %746 = vst.msk [vmem:[%s282 + $0x70] sm:$0xff] %vm731, %v729
      %747 = vst.msk [vmem:[%s282 + $0x78] sm:$0xff] %vm731, %v730
      %s748 = smul.u32 16, %s20
      %p749 = scmp.lt.s32.totalorder %s748, 31
      %s750 = scalar_select %p749, %s748, 31
      %s751 = smul.addr %s750, 8
      %s752 = scalar_lea.vmem %s7, %s751
      // Predicated region
      $region49: #{tpu_custom_call.1} parent=47 // pred_check
        %p753 = pneg %p190
      $region50: #{tpu_custom_call.1} parent=47 // pred_check_branch
        %755 = sbr.rel (%p753) target = $region52
      $region51: #{tpu_custom_call.1} parent=47 // pred_region
        %s756 = smul.u32 16, %s20
      $region52: #{tpu_custom_call.1} parent=47 // pred_fallthru
        _
    $region48: #{tpu_custom_call.1} parent=5 // pred_fallthru
      _
    %p757 = scmp.le.s32.totalorder 2, %s15
    // Predicated region
    $region53: #{tpu_custom_call.1} parent=5 // pred_check
      %p758 = pneg %p757
    $region54: #{tpu_custom_call.1} parent=5 // pred_check_branch
      %760 = sbr.rel (%p758) target = $region56
    $region55: #{tpu_custom_call.1} parent=5 // pred_region
      %s761 = ssub.s32 %s15, 2
      // Predicated region
      $region57: #{tpu_custom_call.1} parent=55 // pred_check
        %p762 = pneg %p196
      $region58: #{tpu_custom_call.1} parent=55 // pred_check_branch
        %764 = sbr.rel (%p762) target = $region60
      $region59: #{tpu_custom_call.1} parent=55 // pred_region
        %s765 = smul.u32 16, %s21
        %p766 = scmp.lt.s32.totalorder %s765, 31
        %s767 = scalar_select %p766, %s765, 31
        %s768 = smul.addr %s767, 8
        %s769 = scalar_lea.vmem %s7, %s768
      $region60: #{tpu_custom_call.1} parent=55 // pred_fallthru
        _
    $region56: #{tpu_custom_call.1} parent=5 // pred_fallthru
      _
  $region6: #{tpu_custom_call.1} parent=0 // loop_footer
    %s19 = sadd.s32 1, %s15
  $region7: #{tpu_custom_call.1} parent=0 // loop_footer_branch
    %14 = sbr.rel target = $region3
  $region8: #{tpu_custom_call.1} parent=0 // loop_exit
    _

</llo_original>
